<compile_context>
chip_gen: v7x
topology: tpu7x:2x2x1
jax: 0.10.0
libtpu: 0.0.40
codegen_flags: <defaults>
</compile_context>

<pallas_src>
import numpy as np

import jax
import jax.numpy as jnp
from jax.experimental import pallas as pl
from jax.experimental.pallas import tpu as pltpu


_PREFERRED_COLS = (4096, 2048, 1024, 512, 256, 128)   # lane-dense widths
_TARGET_BLOCK_BYTES = 8 * 1024 * 1024                 # ~8 MiB per block (v7x-friendly)
_VMEM_LIMIT_BYTES = 48 * 1024 * 1024                  # 2x double-buffered 8 MiB blocks + headroom
_MIN_SPLIT_BYTES = 256 * 1024                         # below this, one block is fine
_MIN_BLOCKS = 4                                       # >=4 grid steps: pipelining + 2 TCs on v7x


def _copy_kernel(x_ref, o_ref):
    # Identity forward: y = x.
    o_ref[...] = x_ref[...]


def _identity_2d(x2d: jax.Array) -> jax.Array:
    """Tiled identity copy of a 2-D array (lane dim = full array width)."""
    rows, cols = x2d.shape
    itemsize = np.dtype(x2d.dtype).itemsize
    # Sublane alignment for block rows: 8 (f32), 16 (bf16), 32 (int8/fp8).
    sub = 8 * max(1, 4 // itemsize)
    total_bytes = rows * cols * itemsize

    # Largest multiple-of-`sub` row count keeping one block under the byte cap.
    cap = max(sub, (_TARGET_BLOCK_BYTES // (cols * itemsize)) // sub * sub)

    if total_bytes <= _MIN_SPLIT_BYTES or rows <= sub:
        # Tiny tensor (per-step overhead irrelevant) or too few rows to split
        # legally: one full-extent block.
        block_rows = rows
    else:
        # Aim for >= _MIN_BLOCKS grid steps so input/output DMAs overlap and
        # the grid can shard across TensorCores, but never exceed the byte cap.
        want = -(-rows // _MIN_BLOCKS)                 # ceil(rows / MIN_BLOCKS)
        want = max(sub, (want // sub) * sub)           # sublane-aligned
        block_rows = max(sub, min(cap, want))
        if block_rows >= rows:                         # safety: full extent is always legal
            block_rows = rows

    grid = (pl.cdiv(rows, block_rows),)
    return pl.pallas_call(
        _copy_kernel,
        out_shape=jax.ShapeDtypeStruct((rows, cols), x2d.dtype),
        grid_spec=pltpu.PrefetchScalarGridSpec(
            num_scalar_prefetch=0,
            grid=grid,
            in_specs=[pl.BlockSpec((block_rows, cols), lambda i: (i, 0))],
            out_specs=pl.BlockSpec((block_rows, cols), lambda i: (i, 0)),
        ),
        compiler_params=pltpu.CompilerParams(
            dimension_semantics=("parallel",),
            vmem_limit_bytes=_VMEM_LIMIT_BYTES,
        ),
    )(x2d)


def _identity_1d(flat: jax.Array) -> jax.Array:
    """Tiled identity copy of a flat array; last block may be partial (masked)."""
    (n,) = flat.shape
    itemsize = np.dtype(flat.dtype).itemsize
    lane_blk = 8 * 128                                  # one f32 vreg worth of elements

    if n <= lane_blk or n * itemsize <= _MIN_SPLIT_BYTES:
        blk = n                                         # single full-extent block
    else:
        cap = max(lane_blk, (_TARGET_BLOCK_BYTES // itemsize) // lane_blk * lane_blk)
        want = -(-n // _MIN_BLOCKS)                     # ceil(n / MIN_BLOCKS)
        want = -(-want // lane_blk) * lane_blk          # round up to 1024-elem multiple
        blk = min(cap, want)

    grid = (pl.cdiv(n, blk),)
    return pl.pallas_call(
        _copy_kernel,
        out_shape=jax.ShapeDtypeStruct((n,), flat.dtype),
        grid_spec=pltpu.PrefetchScalarGridSpec(
            num_scalar_prefetch=0,
            grid=grid,
            in_specs=[pl.BlockSpec((blk,), lambda i: (i,))],
            out_specs=pl.BlockSpec((blk,), lambda i: (i,)),
        ),
        compiler_params=pltpu.CompilerParams(
            dimension_semantics=("parallel",),
            vmem_limit_bytes=_VMEM_LIMIT_BYTES,
        ),
    )(flat)


def linear_forward(x: jax.Array) -> jax.Array:
    """Identity forward of the `Linear` activation.

    Matches the PyTorch module exactly (`return x`) with zero HBM traffic —
    the functional equivalent of buffer aliasing / donation.
    """
    return x


def linear_copy(x: jax.Array) -> jax.Array:
    """Materialize a fresh copy of x via a Pallas kernel (1 HBM read + 1 write)."""
    orig_shape = x.shape
    total = int(np.prod(orig_shape)) if x.ndim else 1
    if total == 0:
        return x

    cols = next((c for c in _PREFERRED_COLS if total % c == 0), None)
    if cols is not None:
        # Lane-dense 2-D path: free reshape in/out, full unmasked vector stores.
        return _identity_2d(x.reshape(total // cols, cols)).reshape(orig_shape)

    # Ragged element count: flat 1-D copy, masked partial tail block.
    return _identity_1d(x.reshape(total)).reshape(orig_shape)


class Linear:
    """JAX/Pallas port of the PyTorch `Linear` module (identity forward)."""

    def __init__(self, inplace: bool = False):
        # `inplace` is a torch in-place-memory hint; JAX is functional so it is
        # a no-op here (returning x is already alias-like behavior).
        self.inplace = inplace

    def __call__(self, x: jax.Array) -> jax.Array:
        return linear_forward(x)


if __name__ == "__main__":
    key = jax.random.PRNGKey(0)
    # NCHW-style input consistent with an activation-module usage.
    x = jax.random.normal(key, (2, 4, 16, 16), dtype=jnp.float32) * 5.0

    act = Linear(inplace=False)

    # Default (spec) path: pure identity, no copy, no kernel.
    y = jax.block_until_ready(act(x))
    assert y.shape == x.shape and y.dtype == x.dtype
    np.testing.assert_allclose(np.asarray(y), np.asarray(x), rtol=0, atol=0)

    # Explicit materialized copy via the Pallas kernel (aligned, single block).
    yc = jax.block_until_ready(linear_copy(x))
    assert yc.shape == x.shape and yc.dtype == x.dtype
    np.testing.assert_allclose(np.asarray(yc), np.asarray(x), rtol=0, atol=0)

    # Larger aligned tensor: exercises the multi-block (>= 4 grid steps) path.
    x_big = jax.random.normal(jax.random.PRNGKey(1), (4, 64, 32, 32), dtype=jnp.float32)
    y_big = jax.block_until_ready(linear_copy(x_big))
    np.testing.assert_allclose(np.asarray(y_big), np.asarray(x_big), rtol=0, atol=0)

    # Ragged element count (numel % 128 != 0): 1-D path, no pad/slice round trip.
    x_rag = jax.random.normal(jax.random.PRNGKey(2), (3, 5, 7), dtype=jnp.float32)
    y_rag = jax.block_until_ready(linear_copy(x_rag))
    np.testing.assert_allclose(np.asarray(y_rag), np.asarray(x_rag), rtol=0, atol=0)

    print("KERNEL_OK")
</pallas_src>

<mosaic_0001>
module attributes {stable_mosaic.version = 11 : i64} {
  func.func @_copy_kernel(%arg0: i32, %arg1: memref<1x2048xf32, #tpu.memory_space<vmem>>, %arg2: memref<1x2048xf32, #tpu.memory_space<vmem>>) attributes {dimension_semantics = [#tpu.dimension_semantics<parallel>], iteration_bounds = array<i64: 1>, scalar_prefetch = 0 : i64, scratch_operands = 0 : i64, tpu.core_type = #tpu.core_type<tc>, window_params = [{transform_indices = @transform_0, window_bounds = array<i64: 1, 2048>}, {transform_indices = @transform_1, window_bounds = array<i64: 1, 2048>}]} {
    %c0 = arith.constant 0 : index
    %c0_0 = arith.constant 0 : index
    %0 = vector.load %arg1[%c0, %c0_0] : memref<1x2048xf32, #tpu.memory_space<vmem>>, vector<1x2048xf32>
    %c0_1 = arith.constant 0 : index
    %c0_2 = arith.constant 0 : index
    %1 = vector.load %arg2[%c0_1, %c0_2] : memref<1x2048xf32, #tpu.memory_space<vmem>>, vector<1x2048xf32>
    tpu.vector_store %arg2[%c0_1, %c0_2], %0 {strides = array<i32>} : memref<1x2048xf32, #tpu.memory_space<vmem>>, vector<1x2048xf32>,
    return
  }
  func.func @transform_0(%arg0: i32) -> (i32, i32) {
    %c0_i32 = arith.constant 0 : i32
    %c0_i32_0 = arith.constant 0 : i32
    return %arg0, %c0_i32 : i32, i32
  }
  func.func @transform_1(%arg0: i32) -> (i32, i32) {
    %c0_i32 = arith.constant 0 : i32
    %c0_i32_0 = arith.constant 0 : i32
    return %arg0, %c0_i32 : i32, i32
  }
}

</mosaic_0001>

<llo_original>
// kernel: tpu_custom_call.1
$region0: #{tpu_custom_call.1}
  #allocation0 [shape = 'u32[]', space=smem, size = 0x4, offset = 0x4, fixed_abs, tag = 'smem constant byte address 0x4 - core index']
  #allocation1 [shape = 'u32[144,128]{1,0:T(1,128)}', space=vmem, size = 0x12000, scoped, tag = 'internal scratch']
  %s0 = inlined_call_operand.hbm [shape: f32[1,2048], index: 0, kind: input, shape index: {}]
  %s1 = inlined_call_operand.hbm [shape: f32[1,2048], index: 1, kind: output, shape index: {}]
  %s2 = sld [smem:[#allocation0]]
  $region18: #{tpu_custom_call.1} parent=0
    _
  %s4 = ssub.s32 1, %s2
  %s5 = scalar_select 0, %s4, %s2
  $region1: #{tpu_custom_call.1} parent=0
    #allocation2 [shape = 'u8[8192]{0}', space=vmem, size = 0x2000, scoped, tag = 'input window, operand 0, single buffered']
    #allocation3 [shape = 's32[1]{0}', space=sflag, size = 0x4, scoped, tag = 'scoped memory for tpu_custom_call.1']
    #allocation4 [shape = 's32[1]{0}', space=sflag, size = 0x4, scoped, tag = 'scoped memory for tpu_custom_call.1']
    #allocation5 [shape = 'u8[8192]{0}', space=vmem, size = 0x2000, scoped, tag = 'output window, operand 0, single buffered']
    %6 = vsyncpa [#allocation3], 0
    %7 = vsyncpa [#allocation4], 0
    // Predicated region
    $region2: #{tpu_custom_call.1} parent=1 // pred_check
      _
    $region3: #{tpu_custom_call.1} parent=1 // pred_check_branch
      %9 = sbr.rel (0) target = $region5
    $region4: #{tpu_custom_call.1} parent=1 // pred_region
      %s11 = ssub.s32 256, 256
      %12 = vsyncadd [#allocation3], %s11
      %s14 = sshll.u32 [#allocation2], 4
      %s15 = int_to_ptr.vmem [resolvable:$true] %s14
      %17 = dma.hbm_to_vmem [thread:$0]  %s0, 256, %s15, [#allocation3]
    $region5: #{tpu_custom_call.1} parent=1 // pred_fallthru
      _
    // Predicated region
    $region6: #{tpu_custom_call.1} parent=1 // pred_check
      _
    $region7: #{tpu_custom_call.1} parent=1 // pred_check_branch
      %19 = sbr.rel (0) target = $region9
    $region8: #{tpu_custom_call.1} parent=1 // pred_region
      %20 = dma.done [#allocation3], 256
    $region9: #{tpu_custom_call.1} parent=1 // pred_fallthru
      _
    %v21 = vld [vmem:[#allocation2] sm:$0xff]
    %v22 = vld [vmem:[#allocation2 + $0x8] sm:$0xff]
    %23 = vst [vmem:[#allocation5] sm:$0xff] %v21
    %24 = vst [vmem:[#allocation5 + $0x8] sm:$0xff] %v22
    // Predicated region
    $region10: #{tpu_custom_call.1} parent=1 // pred_check
      _
    $region11: #{tpu_custom_call.1} parent=1 // pred_check_branch
      %26 = sbr.rel (0) target = $region13
    $region12: #{tpu_custom_call.1} parent=1 // pred_region
      %s28 = ssub.s32 256, 256
      %29 = vsyncadd [#allocation4], %s28
      %s31 = sshll.u32 [#allocation5], 4
      %s32 = int_to_ptr.vmem [resolvable:$true] %s31
      %34 = dma.vmem_to_hbm [thread:$0]  %s32, 256, %s1, [#allocation4]
    $region13: #{tpu_custom_call.1} parent=1 // pred_fallthru
      _
    // Predicated region
    $region14: #{tpu_custom_call.1} parent=1 // pred_check
      _
    $region15: #{tpu_custom_call.1} parent=1 // pred_check_branch
      %36 = sbr.rel (0) target = $region17
    $region16: #{tpu_custom_call.1} parent=1 // pred_region
      %37 = dma.done [#allocation4], 256
    $region17: #{tpu_custom_call.1} parent=1 // pred_fallthru
      _
    %38 = vsyncpa [#allocation3], 1
    %39 = vsyncpa [#allocation4], 1

</llo_original>
